<compile_context>
chip_gen: v7x
topology: tpu7x:2x2x1
jax: 0.10.0
libtpu: 0.0.40
codegen_flags: <defaults>
</compile_context>

<pallas_src>
import jax
import jax.numpy as jnp
from jax.experimental import pallas as pl
from jax.experimental.pallas import tpu as pltpu

HIDDEN = 200          # logical hidden width (PyTorch model)
HIDDEN_PAD = 256      # padded to a multiple of 128 lanes (zero pad -> exact)
DEFAULT_TILE_B = 4096 # large batch tile; amortizes per-grid-step overhead


def _round_up(n, m):
    return ((n + m - 1) // m) * m


def _choose_tile_b(batch, target):
    """Batch tile: a multiple of 128 (lane-dense output granule).  For larger
    batches prefer >= 2 grid steps (v7x megacore balance); multiples of 1024
    keep the (tile_b//128, 128) output block sublane-aligned when nb > 1."""
    if batch <= 128:
        return 128
    half = _round_up((batch + 1) // 2, 1024)
    return max(1024, min(target, half))


def mlp_kernel(x_ref, w1_ref, b1_ref, w2_ref, b2_ref, w3_ref, b3_ref,
               o_ref, h1_ref, h2_ref):
    rows, hid = h2_ref.shape
    # fc1 (+ identity dropout) + ReLU.  x is cast to bf16 in-kernel (VPU op
    # hidden under MXU/DMA slack); f32 accumulation on the MXU.
    xb = x_ref[...].astype(jnp.bfloat16)
    h1 = jnp.dot(xb, w1_ref[...], preferred_element_type=jnp.float32)
    h1_ref[...] = jnp.maximum(h1 + b1_ref[...], 0.0).astype(jnp.bfloat16)
    # fc2 (+ identity dropout) + ReLU; stage in bf16 to halve VMEM st/ld traffic.
    h2 = jnp.dot(h1_ref[...], w2_ref[...], preferred_element_type=jnp.float32)
    h2_ref[...] = jnp.maximum(h2 + b2_ref[...], 0.0).astype(jnp.bfloat16)
    # fc3 (hidden -> 1): VPU multiply + XLU lane reduce instead of an N=1 MXU
    # matmul.  Reduce on a (rows//128, 128, hid) view (layout-preserving split of
    # the row dim) so the per-tile result is lane-dense -> unmasked full-width
    # stores.  w3 is f32, so the product/sum accumulate in f32; b3 read from SMEM.
    prod = (h2_ref[...] * w3_ref[...]).reshape(rows // 128, 128, hid)
    o_ref[...] = jnp.sum(prod, axis=-1) + b3_ref[0, 0]


def mimicus_mlp_forward(x, kp, *, tile_b=DEFAULT_TILE_B):
    """x: (B, num_features) f32 (or bf16).  kp: kernel params from prepare_params()."""
    B, F = x.shape
    tb = _choose_tile_b(B, tile_b)
    Bp = _round_up(B, tb)
    if Bp != B:
        x = jnp.pad(x, ((0, Bp - B), (0, 0)))   # only copies when padding is needed
    nb = Bp // tb

    grid_spec = pltpu.PrefetchScalarGridSpec(
        num_scalar_prefetch=0,
        grid=(nb,),
        in_specs=[
            pl.BlockSpec((tb, F), lambda i: (i, 0)),                   # x tile (streamed)
            pl.BlockSpec((F, HIDDEN_PAD), lambda i: (0, 0)),           # w1 (resident)
            pl.BlockSpec((1, HIDDEN_PAD), lambda i: (0, 0)),           # b1
            pl.BlockSpec((HIDDEN_PAD, HIDDEN_PAD), lambda i: (0, 0)),  # w2 (resident)
            pl.BlockSpec((1, HIDDEN_PAD), lambda i: (0, 0)),           # b2
            pl.BlockSpec((1, HIDDEN_PAD), lambda i: (0, 0)),           # w3 row
            pl.BlockSpec(memory_space=pltpu.MemorySpace.SMEM),         # b3 scalar
        ],
        out_specs=pl.BlockSpec((tb // 128, 128), lambda i: (i, 0)),    # lane-dense out
        scratch_shapes=[
            pltpu.VMEM((tb, HIDDEN_PAD), jnp.bfloat16),  # h1 staging
            pltpu.VMEM((tb, HIDDEN_PAD), jnp.bfloat16),  # h2 staging
        ],
    )

    out = pl.pallas_call(
        mlp_kernel,
        out_shape=jax.ShapeDtypeStruct((Bp // 128, 128), jnp.float32),
        grid_spec=grid_spec,
        compiler_params=pltpu.CompilerParams(
            dimension_semantics=("parallel",),        # megacore batch sharding on v7x
            vmem_limit_bytes=48 * 1024 * 1024,        # large tile fits even v5e's scoped VMEM
        ),
    )(x, kp["w1"], kp["b1"], kp["w2"], kp["b2"], kp["w3"], kp["b3"])

    # (Bp//128, 128) row-major == batch order; slice off batch padding.
    return out.reshape(Bp, 1)[:B]


def init_params(key, num_features, hidden=HIDDEN):
    """Logical (f32) params mimicking nn.Linear's U(-1/sqrt(fan_in), 1/sqrt(fan_in)).

    Stored in (in, out) layout (transpose of PyTorch's (out, in))."""
    ks = jax.random.split(key, 6)

    def uniform(k, shape, fan_in):
        bound = 1.0 / jnp.sqrt(jnp.float32(fan_in))
        return jax.random.uniform(k, shape, jnp.float32, -bound, bound)

    return {
        "w1": uniform(ks[0], (num_features, hidden), num_features),
        "b1": uniform(ks[1], (1, hidden), num_features),
        "w2": uniform(ks[2], (hidden, hidden), hidden),
        "b2": uniform(ks[3], (1, hidden), hidden),
        "w3": uniform(ks[4], (hidden, 1), hidden),
        "b3": uniform(ks[5], (1, 1), hidden),
    }


def prepare_params(p, hidden_pad=HIDDEN_PAD):
    """Pad hidden 200->256 with zeros, cast matmul weights to bf16, keep biases /
    fc3 row / b3 in f32.  Zero padding is exact: padded channels stay 0 through
    bias-add/ReLU and contribute nothing to the output."""
    hidden = p["w1"].shape[1]
    pad = hidden_pad - hidden
    return {
        "w1": jnp.pad(p["w1"], ((0, 0), (0, pad))).astype(jnp.bfloat16),
        "b1": jnp.pad(p["b1"], ((0, 0), (0, pad))).astype(jnp.float32),
        "w2": jnp.pad(p["w2"], ((0, pad), (0, pad))).astype(jnp.bfloat16),
        "b2": jnp.pad(p["b2"], ((0, 0), (0, pad))).astype(jnp.float32),
        "w3": jnp.pad(p["w3"], ((0, pad), (0, 0))).T.astype(jnp.float32),  # (1, 256)
        "b3": p["b3"].astype(jnp.float32),                                  # (1, 1)
    }


def reference_forward_f32(x, p):
    """Pure-f32 eval-mode forward (PyTorch semantics)."""
    h1 = jnp.maximum(x @ p["w1"] + p["b1"], 0.0)
    h2 = jnp.maximum(h1 @ p["w2"] + p["b2"], 0.0)
    return h2 @ p["w3"] + p["b3"]


def reference_forward_bf16(x, p):
    """Mirrors the kernel's precision recipe: bf16 MXU inputs, bf16 staging of
    h1/h2, f32 accumulation, f32 fc3 multiply/reduce."""
    w1 = p["w1"].astype(jnp.bfloat16)
    w2 = p["w2"].astype(jnp.bfloat16)
    h1 = jnp.dot(x.astype(jnp.bfloat16), w1,
                 preferred_element_type=jnp.float32) + p["b1"]
    h1 = jnp.maximum(h1, 0.0).astype(jnp.bfloat16)
    h2 = jnp.dot(h1, w2, preferred_element_type=jnp.float32) + p["b2"]
    h2 = jnp.maximum(h2, 0.0).astype(jnp.bfloat16).astype(jnp.float32)
    return jnp.sum(h2 * p["w3"][:, 0], axis=-1, keepdims=True) + p["b3"]


if __name__ == "__main__":
    # TODO(synk): nn.Dropout(p=0.5) is identity here (eval-mode semantics);
    # train-mode RNG masking is not implemented.
    # TODO(synk): x is cast to bf16 for the fc1 MXU feed; if raw MIMICUS features
    # are large-magnitude counts, normalize first or keep fc1's input in f32.
    num_features = 128

    key = jax.random.PRNGKey(0)
    k_params, k_small, k_large = jax.random.split(key, 3)
    params = init_params(k_params, num_features)
    kernel_params = prepare_params(params)

    fwd = jax.jit(lambda xx: mimicus_mlp_forward(xx, kernel_params))

    # Small shape: single 128-row tile.
    x_small = jax.random.normal(k_small, (8, num_features), jnp.float32)
    y_small = jax.block_until_ready(fwd(x_small))
    assert y_small.shape == (8, 1)
    assert jnp.allclose(y_small, reference_forward_bf16(x_small, params),
                        atol=2e-3, rtol=2e-3), "mismatch vs bf16-mirror reference (small)"
    assert jnp.allclose(y_small, reference_forward_f32(x_small, params),
                        atol=5e-2, rtol=5e-2), "mismatch vs f32 reference (small)"

    # Larger batch: exercises multi-step grid (nb=2), batch padding, megacore sharding.
    x_large = jax.random.normal(k_large, (2080, num_features), jnp.float32)
    y_large = jax.block_until_ready(fwd(x_large))
    assert y_large.shape == (2080, 1)
    assert jnp.allclose(y_large, reference_forward_bf16(x_large, params),
                        atol=2e-3, rtol=2e-3), "mismatch vs bf16-mirror reference (large)"
    assert jnp.allclose(y_large, reference_forward_f32(x_large, params),
                        atol=5e-2, rtol=5e-2), "mismatch vs f32 reference (large)"

    print("KERNEL_OK")
</pallas_src>

<mosaic_0001>
module attributes {stable_mosaic.version = 11 : i64} {
  func.func @mlp_kernel(%arg0: i32, %arg1: memref<128x128xf32, #tpu.memory_space<vmem>>, %arg2: memref<128x256xbf16, #tpu.memory_space<vmem>>, %arg3: memref<1x256xf32, #tpu.memory_space<vmem>>, %arg4: memref<256x256xbf16, #tpu.memory_space<vmem>>, %arg5: memref<1x256xf32, #tpu.memory_space<vmem>>, %arg6: memref<1x256xf32, #tpu.memory_space<vmem>>, %arg7: memref<1x1xf32, #tpu.memory_space<smem>>, %arg8: memref<1x128xf32, #tpu.memory_space<vmem>>, %arg9: memref<128x256xbf16, #tpu.memory_space<vmem>>, %arg10: memref<128x256xbf16, #tpu.memory_space<vmem>>) attributes {dimension_semantics = [#tpu.dimension_semantics<parallel>], iteration_bounds = array<i64: 1>, scalar_prefetch = 0 : i64, scratch_operands = 2 : i64, tpu.core_type = #tpu.core_type<tc>, window_params = [{transform_indices = @transform_0, window_bounds = array<i64: 128, 128>}, {pipeline_mode = #tpu.pipeline_mode<synchronous>, transform_indices = @transform_1, window_bounds = array<i64: 128, 256>}, {pipeline_mode = #tpu.pipeline_mode<synchronous>, transform_indices = @transform_2, window_bounds = array<i64: 1, 256>}, {pipeline_mode = #tpu.pipeline_mode<synchronous>, transform_indices = @transform_3, window_bounds = array<i64: 256, 256>}, {pipeline_mode = #tpu.pipeline_mode<synchronous>, transform_indices = @transform_4, window_bounds = array<i64: 1, 256>}, {pipeline_mode = #tpu.pipeline_mode<synchronous>, transform_indices = @transform_5, window_bounds = array<i64: 1, 256>}, {transform_indices = @transform_6, window_bounds = array<i64: 1, 1>}, {transform_indices = @transform_7, window_bounds = array<i64: 1, 128>}]} {
    %c0 = arith.constant 0 : index
    %c0_0 = arith.constant 0 : index
    %0 = vector.load %arg1[%c0, %c0_0] : memref<128x128xf32, #tpu.memory_space<vmem>>, vector<128x128xf32>
    %1 = arith.truncf %0 : vector<128x128xf32> to vector<128x128xbf16>
    %c0_1 = arith.constant 0 : index
    %c0_2 = arith.constant 0 : index
    %2 = vector.load %arg2[%c0_1, %c0_2] : memref<128x256xbf16, #tpu.memory_space<vmem>>, vector<128x256xbf16>
    %cst = arith.constant dense<0.000000e+00> : vector<128x256xf32>
    %3 = tpu.matmul %1, %2, %cst {dimension_numbers = #tpu.dot_dimension_numbers<[1], [0], [0], [1], [0, 0, 1, 1], [], []>} : vector<128x128xbf16>, vector<128x256xbf16>, vector<128x256xf32> -> vector<128x256xf32>
    %c0_3 = arith.constant 0 : index
    %c0_4 = arith.constant 0 : index
    %4 = vector.load %arg3[%c0_3, %c0_4] : memref<1x256xf32, #tpu.memory_space<vmem>>, vector<1x256xf32>
    %5 = vector.broadcast %4 : vector<1x256xf32> to vector<128x256xf32>
    %6 = arith.addf %3, %5 : vector<128x256xf32>
    %cst_5 = arith.constant 0.000000e+00 : f32
    %7 = vector.broadcast %cst_5 : f32 to vector<128x256xf32>
    %8 = arith.maximumf %6, %7 : vector<128x256xf32>
    %9 = arith.truncf %8 : vector<128x256xf32> to vector<128x256xbf16>
    %c0_6 = arith.constant 0 : index
    %c0_7 = arith.constant 0 : index
    %10 = vector.load %arg9[%c0_6, %c0_7] : memref<128x256xbf16, #tpu.memory_space<vmem>>, vector<128x256xbf16>
    tpu.vector_store %arg9[%c0_6, %c0_7], %9 {strides = array<i32>} : memref<128x256xbf16, #tpu.memory_space<vmem>>, vector<128x256xbf16>,
    %c0_8 = arith.constant 0 : index
    %c0_9 = arith.constant 0 : index
    %11 = vector.load %arg9[%c0_8, %c0_9] : memref<128x256xbf16, #tpu.memory_space<vmem>>, vector<128x256xbf16>
    %c0_10 = arith.constant 0 : index
    %c0_11 = arith.constant 0 : index
    %12 = vector.load %arg4[%c0_10, %c0_11] : memref<256x256xbf16, #tpu.memory_space<vmem>>, vector<256x256xbf16>
    %cst_12 = arith.constant dense<0.000000e+00> : vector<128x256xf32>
    %13 = tpu.matmul %11, %12, %cst_12 {dimension_numbers = #tpu.dot_dimension_numbers<[1], [0], [0], [1], [0, 0, 1, 1], [], []>} : vector<128x256xbf16>, vector<256x256xbf16>, vector<128x256xf32> -> vector<128x256xf32>
    %c0_13 = arith.constant 0 : index
    %c0_14 = arith.constant 0 : index
    %14 = vector.load %arg5[%c0_13, %c0_14] : memref<1x256xf32, #tpu.memory_space<vmem>>, vector<1x256xf32>
    %15 = vector.broadcast %14 : vector<1x256xf32> to vector<128x256xf32>
    %16 = arith.addf %13, %15 : vector<128x256xf32>
    %cst_15 = arith.constant 0.000000e+00 : f32
    %17 = vector.broadcast %cst_15 : f32 to vector<128x256xf32>
    %18 = arith.maximumf %16, %17 : vector<128x256xf32>
    %19 = arith.truncf %18 : vector<128x256xf32> to vector<128x256xbf16>
    %c0_16 = arith.constant 0 : index
    %c0_17 = arith.constant 0 : index
    %20 = vector.load %arg10[%c0_16, %c0_17] : memref<128x256xbf16, #tpu.memory_space<vmem>>, vector<128x256xbf16>
    tpu.vector_store %arg10[%c0_16, %c0_17], %19 {strides = array<i32>} : memref<128x256xbf16, #tpu.memory_space<vmem>>, vector<128x256xbf16>,
    %c0_18 = arith.constant 0 : index
    %c0_19 = arith.constant 0 : index
    %21 = vector.load %arg10[%c0_18, %c0_19] : memref<128x256xbf16, #tpu.memory_space<vmem>>, vector<128x256xbf16>
    %c0_20 = arith.constant 0 : index
    %c0_21 = arith.constant 0 : index
    %22 = vector.load %arg6[%c0_20, %c0_21] : memref<1x256xf32, #tpu.memory_space<vmem>>, vector<1x256xf32>
    %23 = arith.extf %21 : vector<128x256xbf16> to vector<128x256xf32>
    %24 = vector.broadcast %22 : vector<1x256xf32> to vector<128x256xf32>
    %25 = arith.mulf %23, %24 : vector<128x256xf32>
    %26 = vector.shape_cast %25 : vector<128x256xf32> to vector<1x128x256xf32>
    %cst_22 = arith.constant dense<0.000000e+00> : vector<1x128xf32>
    %27 = vector.multi_reduction <add>, %26, %cst_22 [2] : vector<1x128x256xf32> to vector<1x128xf32>
    %c0_23 = arith.constant 0 : index
    %c0_24 = arith.constant 0 : index
    %28 = memref.load %arg7[%c0_23, %c0_24] : memref<1x1xf32, #tpu.memory_space<smem>>
    %29 = vector.broadcast %28 : f32 to vector<1x128xf32>
    %30 = arith.addf %27, %29 : vector<1x128xf32>
    %c0_25 = arith.constant 0 : index
    %c0_26 = arith.constant 0 : index
    %31 = vector.load %arg8[%c0_25, %c0_26] : memref<1x128xf32, #tpu.memory_space<vmem>>, vector<1x128xf32>
    tpu.vector_store %arg8[%c0_25, %c0_26], %30 {strides = array<i32>} : memref<1x128xf32, #tpu.memory_space<vmem>>, vector<1x128xf32>,
    return
  }
  func.func @transform_0(%arg0: i32) -> (i32, i32) {
    %c0_i32 = arith.constant 0 : i32
    %c0_i32_0 = arith.constant 0 : i32
    return %arg0, %c0_i32 : i32, i32
  }
  func.func @transform_1(%arg0: i32) -> (i32, i32) {
    %c0_i32 = arith.constant 0 : i32
    %c0_i32_0 = arith.constant 0 : i32
    %c0_i32_1 = arith.constant 0 : i32
    return %c0_i32, %c0_i32_0 : i32, i32
  }
  func.func @transform_2(%arg0: i32) -> (i32, i32) {
    %c0_i32 = arith.constant 0 : i32
    %c0_i32_0 = arith.constant 0 : i32
    %c0_i32_1 = arith.constant 0 : i32
    return %c0_i32, %c0_i32_0 : i32, i32
  }
  func.func @transform_3(%arg0: i32) -> (i32, i32) {
    %c0_i32 = arith.constant 0 : i32
    %c0_i32_0 = arith.constant 0 : i32
    %c0_i32_1 = arith.constant 0 : i32
    return %c0_i32, %c0_i32_0 : i32, i32
  }
  func.func @transform_4(%arg0: i32) -> (i32, i32) {
    %c0_i32 = arith.constant 0 : i32
    %c0_i32_0 = arith.constant 0 : i32
    %c0_i32_1 = arith.constant 0 : i32
    return %c0_i32, %c0_i32_0 : i32, i32
  }
  func.func @transform_5(%arg0: i32) -> (i32, i32) {
    %c0_i32 = arith.constant 0 : i32
    %c0_i32_0 = arith.constant 0 : i32
    %c0_i32_1 = arith.constant 0 : i32
    return %c0_i32, %c0_i32_0 : i32, i32
  }
  func.func @transform_6(%arg0: i32) -> (i32, i32) {
    %c0_i32 = arith.constant 0 : i32
    %c0_i32_0 = arith.constant 0 : i32
    %c0_i32_1 = arith.constant 0 : i32
    return %c0_i32, %c0_i32_0 : i32, i32
  }
  func.func @transform_7(%arg0: i32) -> (i32, i32) {
    %c0_i32 = arith.constant 0 : i32
    %c0_i32_0 = arith.constant 0 : i32
    return %arg0, %c0_i32 : i32, i32
  }
}

</mosaic_0001>

<llo_original>
// kernel: _lambda_.1
$region0: #{_lambda_.1}
  #allocation0 [shape = 'u32[]', space=smem, size = 0x4, offset = 0x4, fixed_abs, tag = 'smem constant byte address 0x4 - core index']
  #allocation1 [shape = 'u32[144,128]{1,0:T(1,128)}', space=vmem, size = 0x12000, scoped, tag = 'internal scratch']
  #allocation2 [shape = 'bf16[128,256]{1,0:T(16,128)(2,1)}', space=vmem, size = 0x10000, scoped, tag = 'scratch operand']
  #allocation3 [shape = 'bf16[128,256]{1,0:T(16,128)(2,1)}', space=vmem, size = 0x10000, scoped, tag = 'scratch operand']
  #allocation4 [shape = 'f32[1,1]{1,0:T(1,128)S(6)}', space=smem, size = 0x200, scoped, tag = 'scoped memory for _lambda_.1']
  %s0 = inlined_call_operand.vmem [shape: f32[128,128], index: 0, kind: input, shape index: {}]
  %s1 = inlined_call_operand.vmem [shape: bf16[128,256], index: 1, kind: input, shape index: {}]
  %s2 = inlined_call_operand.vmem [shape: f32[1,256], index: 2, kind: input, shape index: {}]
  %s3 = inlined_call_operand.vmem [shape: bf16[256,256], index: 3, kind: input, shape index: {}]
  %s4 = inlined_call_operand.vmem [shape: f32[1,256], index: 4, kind: input, shape index: {}]
  %s5 = inlined_call_operand.vmem [shape: f32[1,256], index: 5, kind: input, shape index: {}]
  %s6 = inlined_call_operand.<no memory space> [shape: f32[1,1], index: 6, kind: input, shape index: {}]
  %s7 = inlined_call_operand.vmem [shape: f32[1,128], index: 7, kind: output, shape index: {}]
  %s8 = sld [smem:[#allocation0]]
  $region38: #{_lambda_.1} parent=0
    _
  %s10 = ssub.s32 1, %s8
  %s11 = scalar_select 0, %s10, %s8
  %12 = sst [smem:[#allocation4]] %s6
  // Predicated region
  $region2: #{_lambda_.1} parent=0 // pred_check
    _
  $region3: #{_lambda_.1} parent=0 // pred_check_branch
    %14 = sbr.rel (0) target = $region5
  $region4: #{_lambda_.1} parent=0 // pred_region
    _
  $region5: #{_lambda_.1} parent=0 // pred_fallthru
    _
  // Predicated region
  $region6: #{_lambda_.1} parent=0 // pred_check
    _
  $region7: #{_lambda_.1} parent=0 // pred_check_branch
    %16 = sbr.rel (0) target = $region9
  $region8: #{_lambda_.1} parent=0 // pred_region
    _
  $region9: #{_lambda_.1} parent=0 // pred_fallthru
    _
  // Predicated region
  $region10: #{_lambda_.1} parent=0 // pred_check
    _
  $region11: #{_lambda_.1} parent=0 // pred_check_branch
    %18 = sbr.rel (0) target = $region13
  $region12: #{_lambda_.1} parent=0 // pred_region
    _
  $region13: #{_lambda_.1} parent=0 // pred_fallthru
    _
  // Predicated region
  $region14: #{_lambda_.1} parent=0 // pred_check
    _
  $region15: #{_lambda_.1} parent=0 // pred_check_branch
    %20 = sbr.rel (0) target = $region17
  $region16: #{_lambda_.1} parent=0 // pred_region
    _
  $region17: #{_lambda_.1} parent=0 // pred_fallthru
    _
  // Predicated region
  $region18: #{_lambda_.1} parent=0 // pred_check
    _
  $region19: #{_lambda_.1} parent=0 // pred_check_branch
    %22 = sbr.rel (0) target = $region21
  $region20: #{_lambda_.1} parent=0 // pred_region
    _
  $region21: #{_lambda_.1} parent=0 // pred_fallthru
    _
  // Predicated region
  $region22: #{_lambda_.1} parent=0 // pred_check
    _
  $region23: #{_lambda_.1} parent=0 // pred_check_branch
    %24 = sbr.rel (0) target = $region25
  $region24: #{_lambda_.1} parent=0 // pred_region
    _
  $region25: #{_lambda_.1} parent=0 // pred_fallthru
    _
  // Predicated region
  $region26: #{_lambda_.1} parent=0 // pred_check
    _
  $region27: #{_lambda_.1} parent=0 // pred_check_branch
    %26 = sbr.rel (0) target = $region29
  $region28: #{_lambda_.1} parent=0 // pred_region
    _
  $region29: #{_lambda_.1} parent=0 // pred_fallthru
    _
  %v28 = vld [vmem:[%s0] sm:$0xff]
  %v29 = vld [vmem:[%s0 + $0x8] sm:$0xff]
  %v30 = vld [vmem:[%s0 + $0x10] sm:$0xff]
  %v31 = vld [vmem:[%s0 + $0x18] sm:$0xff]
  %v32 = vld [vmem:[%s0 + $0x20] sm:$0xff]
  %v33 = vld [vmem:[%s0 + $0x28] sm:$0xff]
  %v34 = vld [vmem:[%s0 + $0x30] sm:$0xff]
  %v35 = vld [vmem:[%s0 + $0x38] sm:$0xff]
  %v36 = vld [vmem:[%s0 + $0x40] sm:$0xff]
  %v37 = vld [vmem:[%s0 + $0x48] sm:$0xff]
  %v38 = vld [vmem:[%s0 + $0x50] sm:$0xff]
  %v39 = vld [vmem:[%s0 + $0x58] sm:$0xff]
  %v40 = vld [vmem:[%s0 + $0x60] sm:$0xff]
  %v41 = vld [vmem:[%s0 + $0x68] sm:$0xff]
  %v42 = vld [vmem:[%s0 + $0x70] sm:$0xff]
  %v43 = vld [vmem:[%s0 + $0x78] sm:$0xff]
  %v44 = vpack.c.bf16 %v29, %v28
  %v45 = vpack.c.bf16 %v31, %v30
  %v46 = vpack.c.bf16 %v33, %v32
  %v47 = vpack.c.bf16 %v35, %v34
  %v48 = vpack.c.bf16 %v37, %v36
  %v49 = vpack.c.bf16 %v39, %v38
  %v50 = vpack.c.bf16 %v41, %v40
  %v51 = vpack.c.bf16 %v43, %v42
  %v52 = vld [vmem:[%s1] sm:$0xff]
  %v53 = vld [vmem:[%s1 + $0x8] sm:$0xff]
  %v54 = vld [vmem:[%s1 + $0x10] sm:$0xff]
  %v55 = vld [vmem:[%s1 + $0x18] sm:$0xff]
  %v56 = vld [vmem:[%s1 + $0x20] sm:$0xff]
  %v57 = vld [vmem:[%s1 + $0x28] sm:$0xff]
  %v58 = vld [vmem:[%s1 + $0x30] sm:$0xff]
  %v59 = vld [vmem:[%s1 + $0x38] sm:$0xff]
  %v60 = vld [vmem:[%s1 + $0x40] sm:$0xff]
  %v61 = vld [vmem:[%s1 + $0x48] sm:$0xff]
  %v62 = vld [vmem:[%s1 + $0x50] sm:$0xff]
  %v63 = vld [vmem:[%s1 + $0x58] sm:$0xff]
  %v64 = vld [vmem:[%s1 + $0x60] sm:$0xff]
  %v65 = vld [vmem:[%s1 + $0x68] sm:$0xff]
  %v66 = vld [vmem:[%s1 + $0x70] sm:$0xff]
  %v67 = vld [vmem:[%s1 + $0x78] sm:$0xff]
  %v68 = vld [vmem:[%s2] sm:$0x3]
  %v70 = vlaneseq
  %v71 = vshrl.u32 %v70, 7
  %v72 = vsub.s32 0, %v71
  %v73 = vrot.slane %v68, %v72
  %v74 = vlaneseq
  %v75 = vshrl.u32 %v74, 7
  %v76 = vsub.s32 1, %v75
  %v77 = vrot.slane %v68, %v76
  %v96 = vunpack.c.l.b16 %v52
  %v97 = vunpack.c.h.b16 %v52
  %v98 = vunpack.c.l.b16 %v53
  %v99 = vunpack.c.h.b16 %v53
  %v100 = vunpack.c.l.b16 %v54
  %v101 = vunpack.c.h.b16 %v54
  %v102 = vunpack.c.l.b16 %v55
  %v103 = vunpack.c.h.b16 %v55
  %v104 = vunpack.c.l.b16 %v56
  %v105 = vunpack.c.h.b16 %v56
  %v106 = vunpack.c.l.b16 %v57
  %v107 = vunpack.c.h.b16 %v57
  %v108 = vunpack.c.l.b16 %v58
  %v109 = vunpack.c.h.b16 %v58
  %v110 = vunpack.c.l.b16 %v59
  %v111 = vunpack.c.h.b16 %v59
  %v112 = vunpack.c.l.b16 %v60
  %v113 = vunpack.c.h.b16 %v60
  %v114 = vunpack.c.l.b16 %v61
  %v115 = vunpack.c.h.b16 %v61
  %v116 = vunpack.c.l.b16 %v62
  %v117 = vunpack.c.h.b16 %v62
  %v118 = vunpack.c.l.b16 %v63
  %v119 = vunpack.c.h.b16 %v63
  %v120 = vunpack.c.l.b16 %v64
  %v121 = vunpack.c.h.b16 %v64
  %v122 = vunpack.c.l.b16 %v65
  %v123 = vunpack.c.h.b16 %v65
  %v124 = vunpack.c.l.b16 %v66
  %v125 = vunpack.c.h.b16 %v66
  %v126 = vunpack.c.l.b16 %v67
  %v127 = vunpack.c.h.b16 %v67
  %v128 = vpack.c.b16 %v98, %v96
  %v129 = vpack.c.b16 %v99, %v97
  %v130 = vpack.c.b16 %v102, %v100
  %v131 = vpack.c.b16 %v103, %v101
  %v132 = vpack.c.b16 %v106, %v104
  %v133 = vpack.c.b16 %v107, %v105
  %v134 = vpack.c.b16 %v110, %v108
  %v135 = vpack.c.b16 %v111, %v109
  %v136 = vpack.c.b16 %v114, %v112
  %v137 = vpack.c.b16 %v115, %v113
  %v138 = vpack.c.b16 %v118, %v116
  %v139 = vpack.c.b16 %v119, %v117
  %v140 = vpack.c.b16 %v122, %v120
  %v141 = vpack.c.b16 %v123, %v121
  %v142 = vpack.c.b16 %v126, %v124
  %v143 = vpack.c.b16 %v127, %v125
  %160 = vmatprep.subr.bf16.mxu0 %v129
  %161 = vmatpush1.bf16.msra.mxu0 %v128
  %162 = vmatprep.subr.bf16.mxu0 %v131
  %163 = vmatpush1.bf16.msra.mxu0 %v130
  %164 = vmatprep.subr.bf16.mxu0 %v133
  %165 = vmatpush1.bf16.msra.mxu0 %v132
  %166 = vmatprep.subr.bf16.mxu0 %v135
  %167 = vmatpush1.bf16.msra.mxu0 %v134
  %168 = vmatprep.subr.bf16.mxu0 %v137
  %169 = vmatpush1.bf16.msra.mxu0 %v136
  %170 = vmatprep.subr.bf16.mxu0 %v139
  %171 = vmatpush1.bf16.msra.mxu0 %v138
  %172 = vmatprep.subr.bf16.mxu0 %v141
  %173 = vmatpush1.bf16.msra.mxu0 %v140
  %174 = vmatprep.subr.bf16.mxu0 %v143
  %175 = vmatpush1.bf16.msra.mxu0 %v142
  %176 = vmatprep.subr.bf16.mxu0 0
  %177 = vmatpush1.bf16.msra.mxu0 0
  %178 = vmatprep.subr.bf16.mxu0 0
  %179 = vmatpush1.bf16.msra.mxu0 0
  %180 = vmatprep.subr.bf16.mxu0 0
  %181 = vmatpush1.bf16.msra.mxu0 0
  %182 = vmatprep.subr.bf16.mxu0 0
  %183 = vmatpush1.bf16.msra.mxu0 0
  %184 = vmatprep.subr.bf16.mxu0 0
  %185 = vmatpush1.bf16.msra.mxu0 0
  %186 = vmatprep.subr.bf16.mxu0 0
  %187 = vmatpush1.bf16.msra.mxu0 0
  %188 = vmatprep.subr.bf16.mxu0 0
  %189 = vmatpush1.bf16.msra.mxu0 0
  %190 = vmatprep.subr.bf16.mxu0 0
  %191 = vmatpush1.bf16.msra.mxu0 0
  %192 = vmatprep.mubr.bf16.mxu0 0
  %193 = vmatmul.mubr.bf16.gmra.mrb[0].mxu0 %v44
  %v194 = vpop.f32.mrb[0].mxu0
  %v195 = vadd.f32 %v73, %v194
  %v196 = vpop.f32.mrb[0].mxu0
  %v197 = vadd.f32 %v77, %v196
  %v198 = vpop.f32.mrb[0].mxu0
  %v199 = vadd.f32 %v73, %v198
  %v200 = vpop.f32.mrb[0].mxu0
  %v201 = vadd.f32 %v77, %v200
  %202 = vmatprep.mubr.bf16.mxu0 0
  %203 = vmatmul.mubr.bf16.gmra.mrb[0].mxu0 %v45
  %v204 = vpop.f32.mrb[0].mxu0
  %v205 = vadd.f32 %v73, %v204
  %v206 = vpop.f32.mrb[0].mxu0
  %v207 = vadd.f32 %v77, %v206
  %v208 = vpop.f32.mrb[0].mxu0
  %v209 = vadd.f32 %v73, %v208
  %v210 = vpop.f32.mrb[0].mxu0
  %v211 = vadd.f32 %v77, %v210
  %212 = vmatprep.mubr.bf16.mxu0 0
  %213 = vmatmul.mubr.bf16.gmra.mrb[0].mxu0 %v46
  %v214 = vpop.f32.mrb[0].mxu0
  %v215 = vadd.f32 %v73, %v214
  %v216 = vpop.f32.mrb[0].mxu0
  %v217 = vadd.f32 %v77, %v216
  %v218 = vpop.f32.mrb[0].mxu0
  %v219 = vadd.f32 %v73, %v218
  %v220 = vpop.f32.mrb[0].mxu0
  %v221 = vadd.f32 %v77, %v220
  %222 = vmatprep.mubr.bf16.mxu0 0
  %223 = vmatmul.mubr.bf16.gmra.mrb[0].mxu0 %v47
  %v224 = vpop.f32.mrb[0].mxu0
  %v225 = vadd.f32 %v73, %v224
  %v226 = vpop.f32.mrb[0].mxu0
  %v227 = vadd.f32 %v77, %v226
  %v228 = vpop.f32.mrb[0].mxu0
  %v229 = vadd.f32 %v73, %v228
  %v230 = vpop.f32.mrb[0].mxu0
  %v231 = vadd.f32 %v77, %v230
  %232 = vmatprep.mubr.bf16.mxu0 0
  %233 = vmatmul.mubr.bf16.gmra.mrb[0].mxu0 %v48
  %v234 = vpop.f32.mrb[0].mxu0
  %v235 = vadd.f32 %v73, %v234
  %v236 = vpop.f32.mrb[0].mxu0
  %v237 = vadd.f32 %v77, %v236
  %v238 = vpop.f32.mrb[0].mxu0
  %v239 = vadd.f32 %v73, %v238
  %v240 = vpop.f32.mrb[0].mxu0
  %v241 = vadd.f32 %v77, %v240
  %242 = vmatprep.mubr.bf16.mxu0 0
  %243 = vmatmul.mubr.bf16.gmra.mrb[0].mxu0 %v49
  %v244 = vpop.f32.mrb[0].mxu0
  %v245 = vadd.f32 %v73, %v244
  %v246 = vpop.f32.mrb[0].mxu0
  %v247 = vadd.f32 %v77, %v246
  %v248 = vpop.f32.mrb[0].mxu0
  %v249 = vadd.f32 %v73, %v248
  %v250 = vpop.f32.mrb[0].mxu0
  %v251 = vadd.f32 %v77, %v250
  %252 = vmatprep.mubr.bf16.mxu0 0
  %253 = vmatmul.mubr.bf16.gmra.mrb[0].mxu0 %v50
  %v254 = vpop.f32.mrb[0].mxu0
  %v255 = vadd.f32 %v73, %v254
  %v256 = vpop.f32.mrb[0].mxu0
  %v257 = vadd.f32 %v77, %v256
  %v258 = vpop.f32.mrb[0].mxu0
  %v259 = vadd.f32 %v73, %v258
  %v260 = vpop.f32.mrb[0].mxu0
  %v261 = vadd.f32 %v77, %v260
  %262 = vmatprep.mubr.bf16.mxu0 0
  %263 = vmatmul.mubr.bf16.gmra.mrb[0].mxu0 %v51
  %v264 = vpop.f32.mrb[0].mxu0
  %v265 = vadd.f32 %v73, %v264
  %v266 = vpop.f32.mrb[0].mxu0
  %v267 = vadd.f32 %v77, %v266
  %v268 = vpop.f32.mrb[0].mxu0
  %v269 = vadd.f32 %v73, %v268
  %v270 = vpop.f32.mrb[0].mxu0
  %v271 = vadd.f32 %v77, %v270
  %272 = vdwg.mxu0
  %v273 = vmax.f32 %v195, 0.0
  %v274 = vmax.f32 %v197, 0.0
  %v275 = vmax.f32 %v199, 0.0
  %v276 = vmax.f32 %v201, 0.0
  %v277 = vmax.f32 %v205, 0.0
  %v278 = vmax.f32 %v207, 0.0
  %v279 = vmax.f32 %v209, 0.0
  %v280 = vmax.f32 %v211, 0.0
  %v281 = vmax.f32 %v215, 0.0
  %v282 = vmax.f32 %v217, 0.0
  %v283 = vmax.f32 %v219, 0.0
  %v284 = vmax.f32 %v221, 0.0
  %v285 = vmax.f32 %v225, 0.0
  %v286 = vmax.f32 %v227, 0.0
  %v287 = vmax.f32 %v229, 0.0
  %v288 = vmax.f32 %v231, 0.0
  %v289 = vmax.f32 %v235, 0.0
  %v290 = vmax.f32 %v237, 0.0
  %v291 = vmax.f32 %v239, 0.0
  %v292 = vmax.f32 %v241, 0.0
  %v293 = vmax.f32 %v245, 0.0
  %v294 = vmax.f32 %v247, 0.0
  %v295 = vmax.f32 %v249, 0.0
  %v296 = vmax.f32 %v251, 0.0
  %v297 = vmax.f32 %v255, 0.0
  %v298 = vmax.f32 %v257, 0.0
  %v299 = vmax.f32 %v259, 0.0
  %v300 = vmax.f32 %v261, 0.0
  %v301 = vmax.f32 %v265, 0.0
  %v302 = vmax.f32 %v267, 0.0
  %v303 = vmax.f32 %v269, 0.0
  %v304 = vmax.f32 %v271, 0.0
  %v305 = vpack.c.bf16 %v275, %v273
  %v306 = vpack.c.bf16 %v276, %v274
  %v307 = vpack.c.bf16 %v279, %v277
  %v308 = vpack.c.bf16 %v280, %v278
  %v309 = vpack.c.bf16 %v283, %v281
  %v310 = vpack.c.bf16 %v284, %v282
  %v311 = vpack.c.bf16 %v287, %v285
  %v312 = vpack.c.bf16 %v288, %v286
  %v313 = vpack.c.bf16 %v291, %v289
  %v314 = vpack.c.bf16 %v292, %v290
  %v315 = vpack.c.bf16 %v295, %v293
  %v316 = vpack.c.bf16 %v296, %v294
  %v317 = vpack.c.bf16 %v299, %v297
  %v318 = vpack.c.bf16 %v300, %v298
  %v319 = vpack.c.bf16 %v303, %v301
  %v320 = vpack.c.bf16 %v304, %v302
  %321 = vst [vmem:[#allocation2] sm:$0xff] %v305
  %322 = vst [vmem:[#allocation2 + $0x8] sm:$0xff] %v306
  %323 = vst [vmem:[#allocation2 + $0x10] sm:$0xff] %v307
  %324 = vst [vmem:[#allocation2 + $0x18] sm:$0xff] %v308
  %325 = vst [vmem:[#allocation2 + $0x20] sm:$0xff] %v309
  %326 = vst [vmem:[#allocation2 + $0x28] sm:$0xff] %v310
  %327 = vst [vmem:[#allocation2 + $0x30] sm:$0xff] %v311
  %328 = vst [vmem:[#allocation2 + $0x38] sm:$0xff] %v312
  %329 = vst [vmem:[#allocation2 + $0x40] sm:$0xff] %v313
  %330 = vst [vmem:[#allocation2 + $0x48] sm:$0xff] %v314
  %331 = vst [vmem:[#allocation2 + $0x50] sm:$0xff] %v315
  %332 = vst [vmem:[#allocation2 + $0x58] sm:$0xff] %v316
  %333 = vst [vmem:[#allocation2 + $0x60] sm:$0xff] %v317
  %334 = vst [vmem:[#allocation2 + $0x68] sm:$0xff] %v318
  %335 = vst [vmem:[#allocation2 + $0x70] sm:$0xff] %v319
  %336 = vst [vmem:[#allocation2 + $0x78] sm:$0xff] %v320
  %v337 = vld [vmem:[#allocation2] sm:$0xff]
  %v338 = vld [vmem:[#allocation2 + $0x8] sm:$0xff]
  %v339 = vld [vmem:[#allocation2 + $0x10] sm:$0xff]
  %v340 = vld [vmem:[#allocation2 + $0x18] sm:$0xff]
  %v341 = vld [vmem:[#allocation2 + $0x20] sm:$0xff]
  %v342 = vld [vmem:[#allocation2 + $0x28] sm:$0xff]
  %v343 = vld [vmem:[#allocation2 + $0x30] sm:$0xff]
  %v344 = vld [vmem:[#allocation2 + $0x38] sm:$0xff]
  %v345 = vld [vmem:[#allocation2 + $0x40] sm:$0xff]
  %v346 = vld [vmem:[#allocation2 + $0x48] sm:$0xff]
  %v347 = vld [vmem:[#allocation2 + $0x50] sm:$0xff]
  %v348 = vld [vmem:[#allocation2 + $0x58] sm:$0xff]
  %v349 = vld [vmem:[#allocation2 + $0x60] sm:$0xff]
  %v350 = vld [vmem:[#allocation2 + $0x68] sm:$0xff]
  %v351 = vld [vmem:[#allocation2 + $0x70] sm:$0xff]
  %v352 = vld [vmem:[#allocation2 + $0x78] sm:$0xff]
  %v353 = vld [vmem:[%s3] sm:$0xff]
  %v354 = vld [vmem:[%s3 + $0x8] sm:$0xff]
  %v355 = vld [vmem:[%s3 + $0x10] sm:$0xff]
  %v356 = vld [vmem:[%s3 + $0x18] sm:$0xff]
  %v357 = vld [vmem:[%s3 + $0x20] sm:$0xff]
  %v358 = vld [vmem:[%s3 + $0x28] sm:$0xff]
  %v359 = vld [vmem:[%s3 + $0x30] sm:$0xff]
  %v360 = vld [vmem:[%s3 + $0x38] sm:$0xff]
  %v361 = vld [vmem:[%s3 + $0x40] sm:$0xff]
  %v362 = vld [vmem:[%s3 + $0x48] sm:$0xff]
  %v363 = vld [vmem:[%s3 + $0x50] sm:$0xff]
  %v364 = vld [vmem:[%s3 + $0x58] sm:$0xff]
  %v365 = vld [vmem:[%s3 + $0x60] sm:$0xff]
  %v366 = vld [vmem:[%s3 + $0x68] sm:$0xff]
  %v367 = vld [vmem:[%s3 + $0x70] sm:$0xff]
  %v368 = vld [vmem:[%s3 + $0x78] sm:$0xff]
  %v369 = vld [vmem:[%s3 + $0x80] sm:$0xff]
  %v370 = vld [vmem:[%s3 + $0x88] sm:$0xff]
  %v371 = vld [vmem:[%s3 + $0x90] sm:$0xff]
  %v372 = vld [vmem:[%s3 + $0x98] sm:$0xff]
  %v373 = vld [vmem:[%s3 + $0xa0] sm:$0xff]
  %v374 = vld [vmem:[%s3 + $0xa8] sm:$0xff]
  %v375 = vld [vmem:[%s3 + $0xb0] sm:$0xff]
  %v376 = vld [vmem:[%s3 + $0xb8] sm:$0xff]
  %v377 = vld [vmem:[%s3 + $0xc0] sm:$0xff]
  %v378 = vld [vmem:[%s3 + $0xc8] sm:$0xff]
  %v379 = vld [vmem:[%s3 + $0xd0] sm:$0xff]
  %v380 = vld [vmem:[%s3 + $0xd8] sm:$0xff]
  %v381 = vld [vmem:[%s3 + $0xe0] sm:$0xff]
  %v382 = vld [vmem:[%s3 + $0xe8] sm:$0xff]
  %v383 = vld [vmem:[%s3 + $0xf0] sm:$0xff]
  %v384 = vld [vmem:[%s3 + $0xf8] sm:$0xff]
  %v385 = vld [vmem:[%s4] sm:$0x3]
  %v387 = vlaneseq
  %v388 = vshrl.u32 %v387, 7
  %v389 = vsub.s32 0, %v388
  %v390 = vrot.slane %v385, %v389
  %v391 = vlaneseq
  %v392 = vshrl.u32 %v391, 7
  %v393 = vsub.s32 1, %v392
  %v394 = vrot.slane %v385, %v393
  %v429 = vunpack.c.l.b16 %v353
  %v430 = vunpack.c.h.b16 %v353
  %v431 = vunpack.c.l.b16 %v354
  %v432 = vunpack.c.h.b16 %v354
  %v433 = vunpack.c.l.b16 %v355
  %v434 = vunpack.c.h.b16 %v355
  %v435 = vunpack.c.l.b16 %v356
  %v436 = vunpack.c.h.b16 %v356
  %v437 = vunpack.c.l.b16 %v357
  %v438 = vunpack.c.h.b16 %v357
  %v439 = vunpack.c.l.b16 %v358
  %v440 = vunpack.c.h.b16 %v358
  %v441 = vunpack.c.l.b16 %v359
  %v442 = vunpack.c.h.b16 %v359
  %v443 = vunpack.c.l.b16 %v360
  %v444 = vunpack.c.h.b16 %v360
  %v445 = vunpack.c.l.b16 %v361
  %v446 = vunpack.c.h.b16 %v361
  %v447 = vunpack.c.l.b16 %v362
  %v448 = vunpack.c.h.b16 %v362
  %v449 = vunpack.c.l.b16 %v363
  %v450 = vunpack.c.h.b16 %v363
  %v451 = vunpack.c.l.b16 %v364
  %v452 = vunpack.c.h.b16 %v364
  %v453 = vunpack.c.l.b16 %v365
  %v454 = vunpack.c.h.b16 %v365
  %v455 = vunpack.c.l.b16 %v366
  %v456 = vunpack.c.h.b16 %v366
  %v457 = vunpack.c.l.b16 %v367
  %v458 = vunpack.c.h.b16 %v367
  %v459 = vunpack.c.l.b16 %v368
  %v460 = vunpack.c.h.b16 %v368
  %v461 = vunpack.c.l.b16 %v369
  %v462 = vunpack.c.h.b16 %v369
  %v463 = vunpack.c.l.b16 %v370
  %v464 = vunpack.c.h.b16 %v370
  %v465 = vunpack.c.l.b16 %v371
  %v466 = vunpack.c.h.b16 %v371
  %v467 = vunpack.c.l.b16 %v372
  %v468 = vunpack.c.h.b16 %v372
  %v469 = vunpack.c.l.b16 %v373
  %v470 = vunpack.c.h.b16 %v373
  %v471 = vunpack.c.l.b16 %v374
  %v472 = vunpack.c.h.b16 %v374
  %v473 = vunpack.c.l.b16 %v375
  %v474 = vunpack.c.h.b16 %v375
  %v475 = vunpack.c.l.b16 %v376
  %v476 = vunpack.c.h.b16 %v376
  %v477 = vunpack.c.l.b16 %v377
  %v478 = vunpack.c.h.b16 %v377
  %v479 = vunpack.c.l.b16 %v378
  %v480 = vunpack.c.h.b16 %v378
  %v481 = vunpack.c.l.b16 %v379
  %v482 = vunpack.c.h.b16 %v379
  %v483 = vunpack.c.l.b16 %v380
  %v484 = vunpack.c.h.b16 %v380
  %v485 = vunpack.c.l.b16 %v381
  %v486 = vunpack.c.h.b16 %v381
  %v487 = vunpack.c.l.b16 %v382
  %v488 = vunpack.c.h.b16 %v382
  %v489 = vunpack.c.l.b16 %v383
  %v490 = vunpack.c.h.b16 %v383
  %v491 = vunpack.c.l.b16 %v384
  %v492 = vunpack.c.h.b16 %v384
  %v493 = vpack.c.b16 %v431, %v429
  %v494 = vpack.c.b16 %v432, %v430
  %v495 = vpack.c.b16 %v435, %v433
  %v496 = vpack.c.b16 %v436, %v434
  %v497 = vpack.c.b16 %v439, %v437
  %v498 = vpack.c.b16 %v440, %v438
  %v499 = vpack.c.b16 %v443, %v441
  %v500 = vpack.c.b16 %v444, %v442
  %v501 = vpack.c.b16 %v447, %v445
  %v502 = vpack.c.b16 %v448, %v446
  %v503 = vpack.c.b16 %v451, %v449
  %v504 = vpack.c.b16 %v452, %v450
  %v505 = vpack.c.b16 %v455, %v453
  %v506 = vpack.c.b16 %v456, %v454
  %v507 = vpack.c.b16 %v459, %v457
  %v508 = vpack.c.b16 %v460, %v458
  %v509 = vpack.c.b16 %v463, %v461
  %v510 = vpack.c.b16 %v464, %v462
  %v511 = vpack.c.b16 %v467, %v465
  %v512 = vpack.c.b16 %v468, %v466
  %v513 = vpack.c.b16 %v471, %v469
  %v514 = vpack.c.b16 %v472, %v470
  %v515 = vpack.c.b16 %v475, %v473
  %v516 = vpack.c.b16 %v476, %v474
  %v517 = vpack.c.b16 %v479, %v477
  %v518 = vpack.c.b16 %v480, %v478
  %v519 = vpack.c.b16 %v483, %v481
  %v520 = vpack.c.b16 %v484, %v482
  %v521 = vpack.c.b16 %v487, %v485
  %v522 = vpack.c.b16 %v488, %v486
  %v523 = vpack.c.b16 %v491, %v489
  %v524 = vpack.c.b16 %v492, %v490
  %557 = vmatprep.subr.bf16.mxu0 %v494
  %558 = vmatpush1.bf16.msra.mxu0 %v493
  %559 = vmatprep.subr.bf16.mxu0 %v496
  %560 = vmatpush1.bf16.msra.mxu0 %v495
  %561 = vmatprep.subr.bf16.mxu0 %v498
  %562 = vmatpush1.bf16.msra.mxu0 %v497
  %563 = vmatprep.subr.bf16.mxu0 %v500
  %564 = vmatpush1.bf16.msra.mxu0 %v499
  %565 = vmatprep.subr.bf16.mxu0 %v502
  %566 = vmatpush1.bf16.msra.mxu0 %v501
  %567 = vmatprep.subr.bf16.mxu0 %v504
  %568 = vmatpush1.bf16.msra.mxu0 %v503
  %569 = vmatprep.subr.bf16.mxu0 %v506
  %570 = vmatpush1.bf16.msra.mxu0 %v505
  %571 = vmatprep.subr.bf16.mxu0 %v508
  %572 = vmatpush1.bf16.msra.mxu0 %v507
  %573 = vmatprep.subr.bf16.mxu0 %v510
  %574 = vmatpush1.bf16.msra.mxu0 %v509
  %575 = vmatprep.subr.bf16.mxu0 %v512
  %576 = vmatpush1.bf16.msra.mxu0 %v511
  %577 = vmatprep.subr.bf16.mxu0 %v514
  %578 = vmatpush1.bf16.msra.mxu0 %v513
  %579 = vmatprep.subr.bf16.mxu0 %v516
  %580 = vmatpush1.bf16.msra.mxu0 %v515
  %581 = vmatprep.subr.bf16.mxu0 %v518
  %582 = vmatpush1.bf16.msra.mxu0 %v517
  %583 = vmatprep.subr.bf16.mxu0 %v520
  %584 = vmatpush1.bf16.msra.mxu0 %v519
  %585 = vmatprep.subr.bf16.mxu0 %v522
  %586 = vmatpush1.bf16.msra.mxu0 %v521
  %587 = vmatprep.subr.bf16.mxu0 %v524
  %588 = vmatpush1.bf16.msra.mxu0 %v523
  %589 = vmatprep.mubr.bf16.mxu0 %v338
  %590 = vmatmul.mubr.bf16.gmra.mrb[0].mxu0 %v337
  %v591 = vpop.f32.mrb[0].mxu0
  %v592 = vadd.f32 %v390, %v591
  %v593 = vpop.f32.mrb[0].mxu0
  %v594 = vadd.f32 %v394, %v593
  %v595 = vpop.f32.mrb[0].mxu0
  %v596 = vadd.f32 %v390, %v595
  %v597 = vpop.f32.mrb[0].mxu0
  %v598 = vadd.f32 %v394, %v597
  %599 = vmatprep.mubr.bf16.mxu0 %v340
  %600 = vmatmul.mubr.bf16.gmra.mrb[0].mxu0 %v339
  %v601 = vpop.f32.mrb[0].mxu0
  %v602 = vadd.f32 %v390, %v601
  %v603 = vpop.f32.mrb[0].mxu0
  %v604 = vadd.f32 %v394, %v603
  %v605 = vpop.f32.mrb[0].mxu0
  %v606 = vadd.f32 %v390, %v605
  %v607 = vpop.f32.mrb[0].mxu0
  %v608 = vadd.f32 %v394, %v607
  %609 = vmatprep.mubr.bf16.mxu0 %v342
  %610 = vmatmul.mubr.bf16.gmra.mrb[0].mxu0 %v341
  %v611 = vpop.f32.mrb[0].mxu0
  %v612 = vadd.f32 %v390, %v611
  %v613 = vpop.f32.mrb[0].mxu0
  %v614 = vadd.f32 %v394, %v613
  %v615 = vpop.f32.mrb[0].mxu0
  %v616 = vadd.f32 %v390, %v615
  %v617 = vpop.f32.mrb[0].mxu0
  %v618 = vadd.f32 %v394, %v617
  %619 = vmatprep.mubr.bf16.mxu0 %v344
  %620 = vmatmul.mubr.bf16.gmra.mrb[0].mxu0 %v343
  %v621 = vpop.f32.mrb[0].mxu0
  %v622 = vadd.f32 %v390, %v621
  %v623 = vpop.f32.mrb[0].mxu0
  %v624 = vadd.f32 %v394, %v623
  %v625 = vpop.f32.mrb[0].mxu0
  %v626 = vadd.f32 %v390, %v625
  %v627 = vpop.f32.mrb[0].mxu0
  %v628 = vadd.f32 %v394, %v627
  %629 = vmatprep.mubr.bf16.mxu0 %v346
  %630 = vmatmul.mubr.bf16.gmra.mrb[0].mxu0 %v345
  %v631 = vpop.f32.mrb[0].mxu0
  %v632 = vadd.f32 %v390, %v631
  %v633 = vpop.f32.mrb[0].mxu0
  %v634 = vadd.f32 %v394, %v633
  %v635 = vpop.f32.mrb[0].mxu0
  %v636 = vadd.f32 %v390, %v635
  %v637 = vpop.f32.mrb[0].mxu0
  %v638 = vadd.f32 %v394, %v637
  %639 = vmatprep.mubr.bf16.mxu0 %v348
  %640 = vmatmul.mubr.bf16.gmra.mrb[0].mxu0 %v347
  %v641 = vpop.f32.mrb[0].mxu0
  %v642 = vadd.f32 %v390, %v641
  %v643 = vpop.f32.mrb[0].mxu0
  %v644 = vadd.f32 %v394, %v643
  %v645 = vpop.f32.mrb[0].mxu0
  %v646 = vadd.f32 %v390, %v645
  %v647 = vpop.f32.mrb[0].mxu0
  %v648 = vadd.f32 %v394, %v647
  %649 = vmatprep.mubr.bf16.mxu0 %v350
  %650 = vmatmul.mubr.bf16.gmra.mrb[0].mxu0 %v349
  %v651 = vpop.f32.mrb[0].mxu0
  %v652 = vadd.f32 %v390, %v651
  %v653 = vpop.f32.mrb[0].mxu0
  %v654 = vadd.f32 %v394, %v653
  %v655 = vpop.f32.mrb[0].mxu0
  %v656 = vadd.f32 %v390, %v655
  %v657 = vpop.f32.mrb[0].mxu0
  %v658 = vadd.f32 %v394, %v657
  %659 = vmatprep.mubr.bf16.mxu0 %v352
  %660 = vmatmul.mubr.bf16.gmra.mrb[0].mxu0 %v351
  %v661 = vpop.f32.mrb[0].mxu0
  %v662 = vadd.f32 %v390, %v661
  %v663 = vpop.f32.mrb[0].mxu0
  %v664 = vadd.f32 %v394, %v663
  %v665 = vpop.f32.mrb[0].mxu0
  %v666 = vadd.f32 %v390, %v665
  %v667 = vpop.f32.mrb[0].mxu0
  %v668 = vadd.f32 %v394, %v667
  %669 = vdwg.mxu0
  %v670 = vmax.f32 %v592, 0.0
  %v671 = vmax.f32 %v594, 0.0
  %v672 = vmax.f32 %v596, 0.0
  %v673 = vmax.f32 %v598, 0.0
  %v674 = vmax.f32 %v602, 0.0
  %v675 = vmax.f32 %v604, 0.0
  %v676 = vmax.f32 %v606, 0.0
  %v677 = vmax.f32 %v608, 0.0
  %v678 = vmax.f32 %v612, 0.0
  %v679 = vmax.f32 %v614, 0.0
  %v680 = vmax.f32 %v616, 0.0
  %v681 = vmax.f32 %v618, 0.0
  %v682 = vmax.f32 %v622, 0.0
  %v683 = vmax.f32 %v624, 0.0
  %v684 = vmax.f32 %v626, 0.0
  %v685 = vmax.f32 %v628, 0.0
  %v686 = vmax.f32 %v632, 0.0
  %v687 = vmax.f32 %v634, 0.0
  %v688 = vmax.f32 %v636, 0.0
  %v689 = vmax.f32 %v638, 0.0
  %v690 = vmax.f32 %v642, 0.0
  %v691 = vmax.f32 %v644, 0.0
  %v692 = vmax.f32 %v646, 0.0
  %v693 = vmax.f32 %v648, 0.0
  %v694 = vmax.f32 %v652, 0.0
  %v695 = vmax.f32 %v654, 0.0
  %v696 = vmax.f32 %v656, 0.0
  %v697 = vmax.f32 %v658, 0.0
  %v698 = vmax.f32 %v662, 0.0
  %v699 = vmax.f32 %v664, 0.0
  %v700 = vmax.f32 %v666, 0.0
  %v701 = vmax.f32 %v668, 0.0
  %v702 = vpack.c.bf16 %v672, %v670
  %v703 = vpack.c.bf16 %v673, %v671
  %v704 = vpack.c.bf16 %v676, %v674
  %v705 = vpack.c.bf16 %v677, %v675
  %v706 = vpack.c.bf16 %v680, %v678
  %v707 = vpack.c.bf16 %v681, %v679
  %v708 = vpack.c.bf16 %v684, %v682
  %v709 = vpack.c.bf16 %v685, %v683
  %v710 = vpack.c.bf16 %v688, %v686
  %v711 = vpack.c.bf16 %v689, %v687
  %v712 = vpack.c.bf16 %v692, %v690
  %v713 = vpack.c.bf16 %v693, %v691
  %v714 = vpack.c.bf16 %v696, %v694
  %v715 = vpack.c.bf16 %v697, %v695
  %v716 = vpack.c.bf16 %v700, %v698
  %v717 = vpack.c.bf16 %v701, %v699
  %718 = vst [vmem:[#allocation3] sm:$0xff] %v702
  %719 = vst [vmem:[#allocation3 + $0x8] sm:$0xff] %v703
  %720 = vst [vmem:[#allocation3 + $0x10] sm:$0xff] %v704
  %721 = vst [vmem:[#allocation3 + $0x18] sm:$0xff] %v705
  %722 = vst [vmem:[#allocation3 + $0x20] sm:$0xff] %v706
  %723 = vst [vmem:[#allocation3 + $0x28] sm:$0xff] %v707
  %724 = vst [vmem:[#allocation3 + $0x30] sm:$0xff] %v708
  %725 = vst [vmem:[#allocation3 + $0x38] sm:$0xff] %v709
  %726 = vst [vmem:[#allocation3 + $0x40] sm:$0xff] %v710
  %727 = vst [vmem:[#allocation3 + $0x48] sm:$0xff] %v711
  %728 = vst [vmem:[#allocation3 + $0x50] sm:$0xff] %v712
  %729 = vst [vmem:[#allocation3 + $0x58] sm:$0xff] %v713
  %730 = vst [vmem:[#allocation3 + $0x60] sm:$0xff] %v714
  %731 = vst [vmem:[#allocation3 + $0x68] sm:$0xff] %v715
  %732 = vst [vmem:[#allocation3 + $0x70] sm:$0xff] %v716
  %733 = vst [vmem:[#allocation3 + $0x78] sm:$0xff] %v717
  %v734 = vld [vmem:[#allocation3] sm:$0xff]
  %v735 = vld [vmem:[#allocation3 + $0x8] sm:$0xff]
  %v736 = vld [vmem:[#allocation3 + $0x10] sm:$0xff]
  %v737 = vld [vmem:[#allocation3 + $0x18] sm:$0xff]
  %v738 = vld [vmem:[#allocation3 + $0x20] sm:$0xff]
  %v739 = vld [vmem:[#allocation3 + $0x28] sm:$0xff]
  %v740 = vld [vmem:[#allocation3 + $0x30] sm:$0xff]
  %v741 = vld [vmem:[#allocation3 + $0x38] sm:$0xff]
  %v742 = vld [vmem:[#allocation3 + $0x40] sm:$0xff]
  %v743 = vld [vmem:[#allocation3 + $0x48] sm:$0xff]
  %v744 = vld [vmem:[#allocation3 + $0x50] sm:$0xff]
  %v745 = vld [vmem:[#allocation3 + $0x58] sm:$0xff]
  %v746 = vld [vmem:[#allocation3 + $0x60] sm:$0xff]
  %v747 = vld [vmem:[#allocation3 + $0x68] sm:$0xff]
  %v748 = vld [vmem:[#allocation3 + $0x70] sm:$0xff]
  %v749 = vld [vmem:[#allocation3 + $0x78] sm:$0xff]
  %v750 = vld [vmem:[%s5] sm:$0x3]
  %v751 = vunpack.c.l.bf16 %v734
  %v752 = vunpack.c.l.bf16 %v735
  %v753 = vunpack.c.h.bf16 %v734
  %v754 = vunpack.c.h.bf16 %v735
  %v755 = vunpack.c.l.bf16 %v736
  %v756 = vunpack.c.l.bf16 %v737
  %v757 = vunpack.c.h.bf16 %v736
  %v758 = vunpack.c.h.bf16 %v737
  %v759 = vunpack.c.l.bf16 %v738
  %v760 = vunpack.c.l.bf16 %v739
  %v761 = vunpack.c.h.bf16 %v738
  %v762 = vunpack.c.h.bf16 %v739
  %v763 = vunpack.c.l.bf16 %v740
  %v764 = vunpack.c.l.bf16 %v741
  %v765 = vunpack.c.h.bf16 %v740
  %v766 = vunpack.c.h.bf16 %v741
  %v767 = vunpack.c.l.bf16 %v742
  %v768 = vunpack.c.l.bf16 %v743
  %v769 = vunpack.c.h.bf16 %v742
  %v770 = vunpack.c.h.bf16 %v743
  %v771 = vunpack.c.l.bf16 %v744
  %v772 = vunpack.c.l.bf16 %v745
  %v773 = vunpack.c.h.bf16 %v744
  %v774 = vunpack.c.h.bf16 %v745
  %v775 = vunpack.c.l.bf16 %v746
  %v776 = vunpack.c.l.bf16 %v747
  %v777 = vunpack.c.h.bf16 %v746
  %v778 = vunpack.c.h.bf16 %v747
  %v779 = vunpack.c.l.bf16 %v748
  %v780 = vunpack.c.l.bf16 %v749
  %v781 = vunpack.c.h.bf16 %v748
  %v782 = vunpack.c.h.bf16 %v749
  %v784 = vlaneseq
  %v785 = vshrl.u32 %v784, 7
  %v786 = vsub.s32 0, %v785
  %v787 = vrot.slane %v750, %v786
  %v788 = vlaneseq
  %v789 = vshrl.u32 %v788, 7
  %v790 = vsub.s32 1, %v789
  %v791 = vrot.slane %v750, %v790
  %v794 = vmul.f32 %v751, %v787
  %v795 = vmul.f32 %v752, %v791
  %v796 = vmul.f32 %v753, %v787
  %v797 = vmul.f32 %v754, %v791
  %v798 = vmul.f32 %v755, %v787
  %v799 = vmul.f32 %v756, %v791
  %v800 = vmul.f32 %v757, %v787
  %v801 = vmul.f32 %v758, %v791
  %v802 = vmul.f32 %v759, %v787
  %v803 = vmul.f32 %v760, %v791
  %v804 = vmul.f32 %v761, %v787
  %v805 = vmul.f32 %v762, %v791
  %v806 = vmul.f32 %v763, %v787
  %v807 = vmul.f32 %v764, %v791
  %v808 = vmul.f32 %v765, %v787
  %v809 = vmul.f32 %v766, %v791
  %v810 = vmul.f32 %v767, %v787
  %v811 = vmul.f32 %v768, %v791
  %v812 = vmul.f32 %v769, %v787
  %v813 = vmul.f32 %v770, %v791
  %v814 = vmul.f32 %v771, %v787
  %v815 = vmul.f32 %v772, %v791
  %v816 = vmul.f32 %v773, %v787
  %v817 = vmul.f32 %v774, %v791
  %v818 = vmul.f32 %v775, %v787
  %v819 = vmul.f32 %v776, %v791
  %v820 = vmul.f32 %v777, %v787
  %v821 = vmul.f32 %v778, %v791
  %v822 = vmul.f32 %v779, %v787
  %v823 = vmul.f32 %v780, %v791
  %v824 = vmul.f32 %v781, %v787
  %v825 = vmul.f32 %v782, %v791
  %v826 = vadd.f32 %v794, %v795
  %827 = vadd.xlane.f32.xlu0 %v826
  %v828 = vpop.xlane.xlu0 %827
  %v829 = vadd.f32 %v796, %v797
  %830 = vadd.xlane.f32.xlu0 %v829
  %v831 = vpop.xlane.xlu0 %830
  %v832 = vadd.f32 %v798, %v799
  %833 = vadd.xlane.f32.xlu0 %v832
  %v834 = vpop.xlane.xlu0 %833
  %v835 = vadd.f32 %v800, %v801
  %836 = vadd.xlane.f32.xlu0 %v835
  %v837 = vpop.xlane.xlu0 %836
  %v838 = vadd.f32 %v802, %v803
  %839 = vadd.xlane.f32.xlu0 %v838
  %v840 = vpop.xlane.xlu0 %839
  %v841 = vadd.f32 %v804, %v805
  %842 = vadd.xlane.f32.xlu0 %v841
  %v843 = vpop.xlane.xlu0 %842
  %v844 = vadd.f32 %v806, %v807
  %845 = vadd.xlane.f32.xlu0 %v844
  %v846 = vpop.xlane.xlu0 %845
  %v847 = vadd.f32 %v808, %v809
  %848 = vadd.xlane.f32.xlu0 %v847
  %v849 = vpop.xlane.xlu0 %848
  %v850 = vadd.f32 %v810, %v811
  %851 = vadd.xlane.f32.xlu0 %v850
  %v852 = vpop.xlane.xlu0 %851
  %v853 = vadd.f32 %v812, %v813
  %854 = vadd.xlane.f32.xlu0 %v853
  %v855 = vpop.xlane.xlu0 %854
  %v856 = vadd.f32 %v814, %v815
  %857 = vadd.xlane.f32.xlu0 %v856
  %v858 = vpop.xlane.xlu0 %857
  %v859 = vadd.f32 %v816, %v817
  %860 = vadd.xlane.f32.xlu0 %v859
  %v861 = vpop.xlane.xlu0 %860
  %v862 = vadd.f32 %v818, %v819
  %863 = vadd.xlane.f32.xlu0 %v862
  %v864 = vpop.xlane.xlu0 %863
  %v865 = vadd.f32 %v820, %v821
  %866 = vadd.xlane.f32.xlu0 %v865
  %v867 = vpop.xlane.xlu0 %866
  %v868 = vadd.f32 %v822, %v823
  %869 = vadd.xlane.f32.xlu0 %v868
  %v870 = vpop.xlane.xlu0 %869
  %v871 = vadd.f32 %v824, %v825
  %872 = vadd.xlane.f32.xlu0 %v871
  %v873 = vpop.xlane.xlu0 %872
  %s874 = sld [smem:[#allocation4]]
  %v875 = vstv %s874
  %v876 = vadd.f32 %v828, %v875
  %v877 = vadd.f32 %v831, %v875
  %v878 = vadd.f32 %v834, %v875
  %v879 = vadd.f32 %v837, %v875
  %v880 = vadd.f32 %v840, %v875
  %v881 = vadd.f32 %v843, %v875
  %v882 = vadd.f32 %v846, %v875
  %v883 = vadd.f32 %v849, %v875
  %v884 = vadd.f32 %v852, %v875
  %v885 = vadd.f32 %v855, %v875
  %v886 = vadd.f32 %v858, %v875
  %v887 = vadd.f32 %v861, %v875
  %v888 = vadd.f32 %v864, %v875
  %v889 = vadd.f32 %v867, %v875
  %v890 = vadd.f32 %v870, %v875
  %v891 = vadd.f32 %v873, %v875
  %v908 = vlaneseq
  %v909 = vand.u32 %v908, 127
  %v910 = vlaneseq
  %v911 = vshrl.u32 %v910, 7
  %v912 = vsub.s32 %v909, %v911
  %v913 = vrot.slane %v876, %v912
  %v914 = vadd.s32 %v909, 4294967288
  %v915 = vlaneseq
  %v916 = vshrl.u32 %v915, 7
  %v917 = vsub.s32 %v914, %v916
  %v918 = vrot.slane %v877, %v917
  %vm919 = vcmask 130112
  %v920 = vsel %vm919, %v918, %v913
  %v921 = vadd.s32 %v909, 4294967280
  %v922 = vlaneseq
  %v923 = vshrl.u32 %v922, 7
  %v924 = vsub.s32 %v921, %v923
  %v925 = vrot.slane %v878, %v924
  %vm926 = vcmask 195712
  %v927 = vsel %vm926, %v925, %v920
  %v928 = vadd.s32 %v909, 4294967272
  %v929 = vlaneseq
  %v930 = vshrl.u32 %v929, 7
  %v931 = vsub.s32 %v928, %v930
  %v932 = vrot.slane %v879, %v931
  %vm933 = vcmask 261312
  %v934 = vsel %vm933, %v932, %v927
  %v935 = vadd.s32 %v909, 4294967264
  %v936 = vlaneseq
  %v937 = vshrl.u32 %v936, 7
  %v938 = vsub.s32 %v935, %v937
  %v939 = vrot.slane %v880, %v938
  %vm940 = vcmask 326912
  %v941 = vsel %vm940, %v939, %v934
  %v942 = vadd.s32 %v909, 4294967256
  %v943 = vlaneseq
  %v944 = vshrl.u32 %v943, 7
  %v945 = vsub.s32 %v942, %v944
  %v946 = vrot.slane %v881, %v945
  %vm947 = vcmask 392512
  %v948 = vsel %vm947, %v946, %v941
  %v949 = vadd.s32 %v909, 4294967248
  %v950 = vlaneseq
  %v951 = vshrl.u32 %v950, 7
  %v952 = vsub.s32 %v949, %v951
  %v953 = vrot.slane %v882, %v952
  %vm954 = vcmask 458112
  %v955 = vsel %vm954, %v953, %v948
  %v956 = vadd.s32 %v909, 4294967240
  %v957 = vlaneseq
  %v958 = vshrl.u32 %v957, 7
  %v959 = vsub.s32 %v956, %v958
  %v960 = vrot.slane %v883, %v959
  %vm961 = vcmask 523712
  %v962 = vsel %vm961, %v960, %v955
  %v963 = vadd.s32 %v909, 4294967232
  %v964 = vlaneseq
  %v965 = vshrl.u32 %v964, 7
  %v966 = vsub.s32 %v963, %v965
  %v967 = vrot.slane %v884, %v966
  %vm968 = vcmask 589312
  %v969 = vsel %vm968, %v967, %v962
  %v970 = vadd.s32 %v909, 4294967224
  %v971 = vlaneseq
  %v972 = vshrl.u32 %v971, 7
  %v973 = vsub.s32 %v970, %v972
  %v974 = vrot.slane %v885, %v973
  %vm975 = vcmask 654912
  %v976 = vsel %vm975, %v974, %v969
  %v977 = vadd.s32 %v909, 4294967216
  %v978 = vlaneseq
  %v979 = vshrl.u32 %v978, 7
  %v980 = vsub.s32 %v977, %v979
  %v981 = vrot.slane %v886, %v980
  %vm982 = vcmask 720512
  %v983 = vsel %vm982, %v981, %v976
  %v984 = vadd.s32 %v909, 4294967208
  %v985 = vlaneseq
  %v986 = vshrl.u32 %v985, 7
  %v987 = vsub.s32 %v984, %v986
  %v988 = vrot.slane %v887, %v987
  %vm989 = vcmask 786112
  %v990 = vsel %vm989, %v988, %v983
  %v991 = vadd.s32 %v909, 4294967200
  %v992 = vlaneseq
  %v993 = vshrl.u32 %v992, 7
  %v994 = vsub.s32 %v991, %v993
  %v995 = vrot.slane %v888, %v994
  %vm996 = vcmask 851712
  %v997 = vsel %vm996, %v995, %v990
  %v998 = vadd.s32 %v909, 4294967192
  %v999 = vlaneseq
  %v1000 = vshrl.u32 %v999, 7
  %v1001 = vsub.s32 %v998, %v1000
  %v1002 = vrot.slane %v889, %v1001
  %vm1003 = vcmask 917312
  %v1004 = vsel %vm1003, %v1002, %v997
  %v1005 = vadd.s32 %v909, 4294967184
  %v1006 = vlaneseq
  %v1007 = vshrl.u32 %v1006, 7
  %v1008 = vsub.s32 %v1005, %v1007
  %v1009 = vrot.slane %v890, %v1008
  %vm1010 = vcmask 982912
  %v1011 = vsel %vm1010, %v1009, %v1004
  %v1012 = vadd.s32 %v909, 4294967176
  %v1013 = vlaneseq
  %v1014 = vshrl.u32 %v1013, 7
  %v1015 = vsub.s32 %v1012, %v1014
  %v1016 = vrot.slane %v891, %v1015
  %vm1017 = vcmask 1048512
  %v1018 = vsel %vm1017, %v1016, %v1011
  %1020 = vst [vmem:[%s7] sm:$0x1] %v1018
  // Predicated region
  $region30: #{_lambda_.1} parent=0 // pred_check
    _
  $region31: #{_lambda_.1} parent=0 // pred_check_branch
    %1022 = sbr.rel (0) target = $region33
  $region32: #{_lambda_.1} parent=0 // pred_region
    _
  $region33: #{_lambda_.1} parent=0 // pred_fallthru
    _
  // Predicated region
  $region34: #{_lambda_.1} parent=0 // pred_check
    _
  $region35: #{_lambda_.1} parent=0 // pred_check_branch
    %1024 = sbr.rel (0) target = $region37
  $region36: #{_lambda_.1} parent=0 // pred_region
    _
  $region37: #{_lambda_.1} parent=0 // pred_fallthru
    _

</llo_original>
